<compile_context>
chip_gen: v7x
topology: tpu7x:2x2x1
jax: 0.10.0
libtpu: 0.0.40
codegen_flags: <defaults>
</compile_context>

<pallas_src>
import functools

import jax
import jax.numpy as jnp
import numpy as np
from jax.experimental import pallas as pl
from jax.experimental.pallas import tpu as pltpu


def pyrmse_cent_kernel(ot_ref, slab_ref, lab_ref, centers_ref, loss_ref,
                       *, J, C, Cmp):
    # ot      : (B, 2J)         f32  [output | target]
    # slab    : (BJ, C+Cmp+F)   f32  [output_m | output_m_mp | features], joint axis flat
    # lab     : (BJ, 3)         i32  [target_m | target_m_mp | joint_index*C]
    # centers : (J*C, F)        f32
    ot = ot_ref[...]
    B = ot.shape[0]
    inv_b = 1.0 / B                      # Python float -> jaxpr literal, no const capture

    o = ot[:, :J]
    t = ot[:, J:]

    slab = slab_ref[...]
    BJ = slab.shape[0]
    om = slab[:, :C]
    omp = slab[:, C:C + Cmp]
    feat = slab[:, C + Cmp:]

    lab = lab_ref[...]
    tm = lab[:, 0:1]
    tmp_lab = lab[:, 1:2]
    joff = lab[:, 2:3]

    centers = centers_ref[...]
    JC = centers.shape[0]

    # ---- part 1: sum_j 0.5 * mean_b (output - target)^2  (unit joint weights) ----
    diff = o - t
    loss = 0.5 * inv_b * jnp.sum(diff * diff)

    # ---- parts 2 & 3: cross-entropy fused over the flattened (B*J) row axis ----
    def ce_sum(logits, labels):
        m = jnp.max(logits, axis=1, keepdims=True)
        lse = m + jnp.log(jnp.sum(jnp.exp(logits - m), axis=1, keepdims=True))
        col = jax.lax.broadcasted_iota(jnp.int32, logits.shape, 1)
        picked = jnp.sum(jnp.where(col == labels, logits, 0.0),
                         axis=1, keepdims=True)
        return jnp.sum(lse - picked)

    loss = loss + 1.0 * inv_b * ce_sum(om, tm)
    loss = loss + 2.0 * inv_b * ce_sum(omp, tmp_lab)

    # ---- part 4: 0.01 * CenterLoss per joint via ONE label-gather matmul (MXU) ----
    # (the reference's clip(1e-12) floor on off-label distmat entries contributes
    #  ~5e-10 to the total loss; intentionally ignored)
    lab_off = tm + joff                                           # label offset by joint*C
    col_jc = jax.lax.broadcasted_iota(jnp.int32, (BJ, JC), 1)
    oh_jc = (col_jc == lab_off).astype(jnp.float32)
    c_lab = jax.lax.dot_general(oh_jc, centers, (((1,), (0,)), ((), ())),
                                preferred_element_type=jnp.float32)   # (BJ, F)
    d = feat - c_lab
    dist = jnp.clip(jnp.sum(d * d, axis=1, keepdims=True), 1e-12, 1e12)
    loss = loss + 0.01 * inv_b * jnp.sum(dist)

    loss_ref[0, 0] = loss


def pyrmse_loss_cent(output, target, output_m, target_m, output_m_mp, target_m_mp,
                     features, target_m_mp_mp, centers, weights=(1.0, 1.0, 1.0)):
    """centers: the three CenterLoss (C, F) tables pre-stacked to (3*C, F)."""
    del target_m_mp_mp  # unused by the reference forward pass
    B, J = output.shape
    C = output_m.shape[2]
    Cmp = output_m_mp.shape[2]
    F = features.shape[2]
    BJ = B * J

    # The PyTorch module hardcodes weights = [1.0, 1.0, 1.0]; the kernel emits no
    # weight multiplies at all for that case (static check per perf review).
    if tuple(float(w) for w in weights) != (1.0,) * J:
        raise NotImplementedError(
            "PYRMSELoss_Cent hardcodes unit per-joint weights; only the "
            "unit-weight fast path is implemented.")

    # Layout plumbing only: pack the 8 tiny inputs into 4 lane-dense slabs.
    ot = jnp.concatenate([output, target], axis=1).astype(jnp.float32)       # (B, 2J)
    slab = jnp.concatenate(
        [output_m.reshape(BJ, C),
         output_m_mp.reshape(BJ, Cmp),
         features.reshape(BJ, F)], axis=1).astype(jnp.float32)               # (BJ, C+Cmp+F)
    joff = jnp.tile(jnp.arange(J, dtype=jnp.int32) * C, B).reshape(BJ, 1)
    lab = jnp.concatenate(
        [target_m.reshape(BJ, 1).astype(jnp.int32),
         target_m_mp.reshape(BJ, 1).astype(jnp.int32),
         joff], axis=1)                                                      # (BJ, 3)
    centers = centers.astype(jnp.float32)                                    # (J*C, F)

    kernel = functools.partial(pyrmse_cent_kernel, J=J, C=C, Cmp=Cmp)

    inputs = (ot, slab, lab, centers)
    bytes_accessed = sum(int(np.prod(x.shape)) * jnp.dtype(x.dtype).itemsize
                         for x in inputs) + 4
    flops = 2 * BJ * (J * C) * F + 8 * BJ * (C + Cmp) + 6 * BJ * F + 4 * B * J
    transcendentals = BJ * (C + Cmp) + 2 * BJ

    out = pl.pallas_call(
        kernel,
        out_shape=jax.ShapeDtypeStruct((1, 1), jnp.float32),
        in_specs=[pl.BlockSpec(memory_space=pltpu.MemorySpace.VMEM)
                  for _ in inputs],
        out_specs=pl.BlockSpec(memory_space=pltpu.MemorySpace.SMEM),
        cost_estimate=pl.CostEstimate(flops=flops,
                                      transcendentals=transcendentals,
                                      bytes_accessed=bytes_accessed),
    )(*inputs)
    return out[0, 0]


def reference(output, target, output_m, target_m, output_m_mp, target_m_mp,
              features, centers_p, centers_y, centers_r):
    B, J = output.shape
    loss = 0.0
    for idx in range(J):
        loss += 0.5 * jnp.mean((output[:, idx] - target[:, idx]) ** 2)

    def ce(logits, labels):
        lse = jax.nn.logsumexp(logits, axis=1)
        picked = jnp.take_along_axis(logits, labels[:, None], axis=1)[:, 0]
        return jnp.mean(lse - picked)

    for idx in range(J):
        loss += 1.0 * ce(output_m[:, idx, :], target_m[:, idx])
    for idx in range(J):
        loss += 2.0 * ce(output_m_mp[:, idx, :], target_m_mp[:, idx])

    def centerloss(x, labels, centers):
        b = x.shape[0]
        Cn = centers.shape[0]
        distmat = (jnp.sum(x ** 2, 1)[:, None] + jnp.sum(centers ** 2, 1)[None, :]
                   - 2.0 * x @ centers.T)
        mask = (labels[:, None] == jnp.arange(Cn)[None, :]).astype(jnp.float32)
        return jnp.sum(jnp.clip(distmat * mask, 1e-12, 1e12)) / b

    loss += 0.01 * centerloss(features[:, 0, :], target_m[:, 0], centers_p)
    loss += 0.01 * centerloss(features[:, 1, :], target_m[:, 1], centers_y)
    loss += 0.01 * centerloss(features[:, 2, :], target_m[:, 2], centers_r)
    return loss


if __name__ == "__main__":
    key = jax.random.PRNGKey(0)
    B, J, C, Cmp, F = 8, 3, 66, 22, 32   # cls_num = 66, f_dim = 32, Cmp = ceil(66/3)
    ks = jax.random.split(key, 11)

    output = jax.random.normal(ks[0], (B, J), jnp.float32)
    target = jax.random.normal(ks[1], (B, J), jnp.float32)
    output_m = jax.random.normal(ks[2], (B, J, C), jnp.float32)
    target_m = jax.random.randint(ks[3], (B, J), 0, C, jnp.int32)
    output_m_mp = jax.random.normal(ks[4], (B, J, Cmp), jnp.float32)
    target_m_mp = jax.random.randint(ks[5], (B, J), 0, Cmp, jnp.int32)
    features = jax.random.normal(ks[6], (B, J, F), jnp.float32)
    target_m_mp_mp = jax.random.randint(ks[7], (B, J), 0, Cmp, jnp.int32)  # unused

    # CenterLoss parameters (torch.randn(num_classes, feat_dim) equivalents).
    centers_p = jax.random.normal(ks[8], (C, F), jnp.float32)
    centers_y = jax.random.normal(ks[9], (C, F), jnp.float32)
    centers_r = jax.random.normal(ks[10], (C, F), jnp.float32)

    # Stack the CenterLoss tables ONCE, outside the per-step call (hoisted per review).
    centers = jnp.concatenate([centers_p, centers_y, centers_r], axis=0)

    loss = pyrmse_loss_cent(output, target, output_m, target_m, output_m_mp,
                            target_m_mp, features, target_m_mp_mp, centers)
    loss = jax.block_until_ready(loss)

    ref = reference(output, target, output_m, target_m, output_m_mp,
                    target_m_mp, features, centers_p, centers_y, centers_r)
    np.testing.assert_allclose(float(loss), float(ref), rtol=1e-3, atol=1e-3)
    print("KERNEL_OK")
</pallas_src>

<mosaic_0001>
module attributes {stable_mosaic.version = 11 : i64} {
  func.func @pyrmse_cent_kernel(%arg0: memref<8x6xf32, #tpu.memory_space<vmem>>, %arg1: memref<24x120xf32, #tpu.memory_space<vmem>>, %arg2: memref<24x3xi32, #tpu.memory_space<vmem>>, %arg3: memref<198x32xf32, #tpu.memory_space<vmem>>, %arg4: memref<1x1xf32, #tpu.memory_space<smem>>) attributes {dimension_semantics = [], scalar_prefetch = 0 : i64, scratch_operands = 0 : i64, tpu.core_type = #tpu.core_type<tc>} {
    %c0 = arith.constant 0 : index
    %c0_0 = arith.constant 0 : index
    %0 = vector.load %arg0[%c0, %c0_0] : memref<8x6xf32, #tpu.memory_space<vmem>>, vector<8x6xf32>
    %1 = vector.extract_strided_slice %0 {offsets = [0, 0], sizes = [8, 3], strides = [1, 1]} : vector<8x6xf32> to vector<8x3xf32>
    %2 = vector.extract_strided_slice %0 {offsets = [0, 3], sizes = [8, 3], strides = [1, 1]} : vector<8x6xf32> to vector<8x3xf32>
    %c0_1 = arith.constant 0 : index
    %c0_2 = arith.constant 0 : index
    %3 = vector.load %arg1[%c0_1, %c0_2] : memref<24x120xf32, #tpu.memory_space<vmem>>, vector<24x120xf32>
    %4 = vector.extract_strided_slice %3 {offsets = [0, 0], sizes = [24, 66], strides = [1, 1]} : vector<24x120xf32> to vector<24x66xf32>
    %5 = vector.extract_strided_slice %3 {offsets = [0, 66], sizes = [24, 22], strides = [1, 1]} : vector<24x120xf32> to vector<24x22xf32>
    %6 = vector.extract_strided_slice %3 {offsets = [0, 88], sizes = [24, 32], strides = [1, 1]} : vector<24x120xf32> to vector<24x32xf32>
    %c0_3 = arith.constant 0 : index
    %c0_4 = arith.constant 0 : index
    %7 = vector.load %arg2[%c0_3, %c0_4] : memref<24x3xi32, #tpu.memory_space<vmem>>, vector<24x3xi32>
    %8 = vector.extract_strided_slice %7 {offsets = [0, 0], sizes = [24, 1], strides = [1, 1]} : vector<24x3xi32> to vector<24x1xi32>
    %9 = vector.extract_strided_slice %7 {offsets = [0, 1], sizes = [24, 1], strides = [1, 1]} : vector<24x3xi32> to vector<24x1xi32>
    %10 = vector.extract_strided_slice %7 {offsets = [0, 2], sizes = [24, 1], strides = [1, 1]} : vector<24x3xi32> to vector<24x1xi32>
    %c0_5 = arith.constant 0 : index
    %c0_6 = arith.constant 0 : index
    %11 = vector.load %arg3[%c0_5, %c0_6] : memref<198x32xf32, #tpu.memory_space<vmem>>, vector<198x32xf32>
    %12 = arith.subf %1, %2 : vector<8x3xf32>
    %13 = arith.mulf %12, %12 : vector<8x3xf32>
    %14 = vector.shape_cast %13 : vector<8x3xf32> to vector<1x8x3xf32>
    %cst = arith.constant dense<0.000000e+00> : vector<1xf32>
    %15 = vector.multi_reduction <add>, %14, %cst [1, 2] : vector<1x8x3xf32> to vector<1xf32>
    %16 = vector.shape_cast %15 : vector<1xf32> to vector<1x1x1xf32>
    %17 = vector.extract %16[0, 0, 0] : f32 from vector<1x1x1xf32>
    %cst_7 = arith.constant 6.250000e-02 : f32
    %18 = arith.mulf %cst_7, %17 : f32
    %cst_8 = arith.constant dense<0xFF800000> : vector<24xf32>
    %19 = vector.multi_reduction <maximumf>, %4, %cst_8 [1] : vector<24x66xf32> to vector<24xf32>
    %20 = vector.shape_cast %19 : vector<24xf32> to vector<24x1xf32>
    %21 = vector.broadcast %20 : vector<24x1xf32> to vector<24x66xf32>
    %22 = arith.subf %4, %21 : vector<24x66xf32>
    %23 = math.exp %22 : vector<24x66xf32>
    %cst_9 = arith.constant dense<0.000000e+00> : vector<24xf32>
    %24 = vector.multi_reduction <add>, %23, %cst_9 [1] : vector<24x66xf32> to vector<24xf32>
    %25 = vector.shape_cast %24 : vector<24xf32> to vector<24x1xf32>
    %26 = math.log %25 : vector<24x1xf32>
    %27 = arith.addf %20, %26 : vector<24x1xf32>
    %28 = tpu.iota {dimensions = array<i32: 1>} : vector<24x66xi32>
    %29 = vector.broadcast %8 : vector<24x1xi32> to vector<24x66xi32>
    %30 = arith.cmpi eq, %28, %29 : vector<24x66xi32>
    %cst_10 = arith.constant 0.000000e+00 : f32
    %31 = vector.broadcast %cst_10 : f32 to vector<24x66xf32>
    %32 = arith.select %30, %4, %31 : vector<24x66xi1>, vector<24x66xf32>
    %cst_11 = arith.constant dense<0.000000e+00> : vector<24xf32>
    %33 = vector.multi_reduction <add>, %32, %cst_11 [1] : vector<24x66xf32> to vector<24xf32>
    %34 = vector.shape_cast %33 : vector<24xf32> to vector<24x1xf32>
    %35 = arith.subf %27, %34 : vector<24x1xf32>
    %36 = vector.shape_cast %35 : vector<24x1xf32> to vector<1x24x1xf32>
    %cst_12 = arith.constant dense<0.000000e+00> : vector<1xf32>
    %37 = vector.multi_reduction <add>, %36, %cst_12 [1, 2] : vector<1x24x1xf32> to vector<1xf32>
    %38 = vector.shape_cast %37 : vector<1xf32> to vector<1x1x1xf32>
    %39 = vector.extract %38[0, 0, 0] : f32 from vector<1x1x1xf32>
    %cst_13 = arith.constant 1.250000e-01 : f32
    %40 = arith.mulf %cst_13, %39 : f32
    %41 = arith.addf %18, %40 : f32
    %cst_14 = arith.constant dense<0xFF800000> : vector<24xf32>
    %42 = vector.multi_reduction <maximumf>, %5, %cst_14 [1] : vector<24x22xf32> to vector<24xf32>
    %43 = vector.shape_cast %42 : vector<24xf32> to vector<24x1xf32>
    %44 = vector.broadcast %43 : vector<24x1xf32> to vector<24x22xf32>
    %45 = arith.subf %5, %44 : vector<24x22xf32>
    %46 = math.exp %45 : vector<24x22xf32>
    %cst_15 = arith.constant dense<0.000000e+00> : vector<24xf32>
    %47 = vector.multi_reduction <add>, %46, %cst_15 [1] : vector<24x22xf32> to vector<24xf32>
    %48 = vector.shape_cast %47 : vector<24xf32> to vector<24x1xf32>
    %49 = math.log %48 : vector<24x1xf32>
    %50 = arith.addf %43, %49 : vector<24x1xf32>
    %51 = tpu.iota {dimensions = array<i32: 1>} : vector<24x22xi32>
    %52 = vector.broadcast %9 : vector<24x1xi32> to vector<24x22xi32>
    %53 = arith.cmpi eq, %51, %52 : vector<24x22xi32>
    %cst_16 = arith.constant 0.000000e+00 : f32
    %54 = vector.broadcast %cst_16 : f32 to vector<24x22xf32>
    %55 = arith.select %53, %5, %54 : vector<24x22xi1>, vector<24x22xf32>
    %cst_17 = arith.constant dense<0.000000e+00> : vector<24xf32>
    %56 = vector.multi_reduction <add>, %55, %cst_17 [1] : vector<24x22xf32> to vector<24xf32>
    %57 = vector.shape_cast %56 : vector<24xf32> to vector<24x1xf32>
    %58 = arith.subf %50, %57 : vector<24x1xf32>
    %59 = vector.shape_cast %58 : vector<24x1xf32> to vector<1x24x1xf32>
    %cst_18 = arith.constant dense<0.000000e+00> : vector<1xf32>
    %60 = vector.multi_reduction <add>, %59, %cst_18 [1, 2] : vector<1x24x1xf32> to vector<1xf32>
    %61 = vector.shape_cast %60 : vector<1xf32> to vector<1x1x1xf32>
    %62 = vector.extract %61[0, 0, 0] : f32 from vector<1x1x1xf32>
    %cst_19 = arith.constant 2.500000e-01 : f32
    %63 = arith.mulf %cst_19, %62 : f32
    %64 = arith.addf %41, %63 : f32
    %65 = arith.addi %8, %10 : vector<24x1xi32>
    %66 = tpu.iota {dimensions = array<i32: 1>} : vector<24x198xi32>
    %67 = vector.broadcast %65 : vector<24x1xi32> to vector<24x198xi32>
    %68 = arith.cmpi eq, %66, %67 : vector<24x198xi32>
    %69 = arith.extui %68 : vector<24x198xi1> to vector<24x198xi32>
    %70 = arith.sitofp %69 : vector<24x198xi32> to vector<24x198xf32>
    %cst_20 = arith.constant dense<0.000000e+00> : vector<24x32xf32>
    %71 = tpu.matmul %70, %11, %cst_20 {dimension_numbers = #tpu.dot_dimension_numbers<[1], [0], [0], [1], [0, 0, 1, 1], [], []>} : vector<24x198xf32>, vector<198x32xf32>, vector<24x32xf32> -> vector<24x32xf32>
    %72 = arith.subf %6, %71 : vector<24x32xf32>
    %73 = arith.mulf %72, %72 : vector<24x32xf32>
    %cst_21 = arith.constant dense<0.000000e+00> : vector<24xf32>
    %74 = vector.multi_reduction <add>, %73, %cst_21 [1] : vector<24x32xf32> to vector<24xf32>
    %75 = vector.shape_cast %74 : vector<24xf32> to vector<24x1xf32>
    %cst_22 = arith.constant 9.99999996E-13 : f32
    %cst_23 = arith.constant 9.99999995E+11 : f32
    %76 = vector.broadcast %cst_22 : f32 to vector<24x1xf32>
    %77 = arith.maximumf %76, %75 : vector<24x1xf32>
    %78 = vector.broadcast %cst_23 : f32 to vector<24x1xf32>
    %79 = arith.minimumf %78, %77 : vector<24x1xf32>
    %80 = vector.shape_cast %79 : vector<24x1xf32> to vector<1x24x1xf32>
    %cst_24 = arith.constant dense<0.000000e+00> : vector<1xf32>
    %81 = vector.multi_reduction <add>, %80, %cst_24 [1, 2] : vector<1x24x1xf32> to vector<1xf32>
    %82 = vector.shape_cast %81 : vector<1xf32> to vector<1x1x1xf32>
    %83 = vector.extract %82[0, 0, 0] : f32 from vector<1x1x1xf32>
    %cst_25 = arith.constant 1.250000e-03 : f32
    %84 = arith.mulf %cst_25, %83 : f32
    %85 = arith.addf %64, %84 : f32
    %c0_26 = arith.constant 0 : index
    %c0_27 = arith.constant 0 : index
    %86 = memref.load %arg4[%c0_26, %c0_27] : memref<1x1xf32, #tpu.memory_space<smem>>
    memref.store %85, %arg4[%c0_26, %c0_27] : memref<1x1xf32, #tpu.memory_space<smem>>
    return
  }
}

</mosaic_0001>

<llo_original>
// kernel: tpu_custom_call.1
$region0: #{tpu_custom_call.1}
  #allocation0 [shape = 'u32[]', space=smem, size = 0x4, offset = 0x4, fixed_abs, tag = 'smem constant byte address 0x4 - core index']
  #allocation1 [shape = 'u32[144,128]{1,0:T(1,128)}', space=vmem, size = 0x12000, scoped, tag = 'internal scratch']
  %s0 = inlined_call_operand.vmem [shape: f32[8,6], index: 0, kind: input, shape index: {}]
  %s1 = inlined_call_operand.vmem [shape: f32[24,120], index: 1, kind: input, shape index: {}]
  %s2 = inlined_call_operand.vmem [shape: s32[24,3], index: 2, kind: input, shape index: {}]
  %s3 = inlined_call_operand.vmem [shape: f32[198,32], index: 3, kind: input, shape index: {}]
  %s4 = inlined_call_operand.hbm [shape: f32[1,1], index: 4, kind: output, shape index: {}]
  %s5 = sld [smem:[#allocation0]]
  $region26: #{tpu_custom_call.1} parent=0
    _
  %s7 = ssub.s32 1, %s5
  %s8 = scalar_select 0, %s7, %s5
  $region1: #{tpu_custom_call.1} parent=0
    #allocation2 [shape = 'u8[512]{0}', space=smem, size = 0x200, scoped, tag = 'output window, operand 0, single buffered']
    #allocation3 [shape = 's32[1]{0}', space=sflag, size = 0x4, scoped, tag = 'scoped memory for tpu_custom_call.1']
    %9 = vsyncpa [#allocation3], 0
    // Predicated region
    $region2: #{tpu_custom_call.1} parent=1 // pred_check
      _
    $region3: #{tpu_custom_call.1} parent=1 // pred_check_branch
      %11 = sbr.rel (0) target = $region5
    $region4: #{tpu_custom_call.1} parent=1 // pred_region
      _
    $region5: #{tpu_custom_call.1} parent=1 // pred_fallthru
      _
    // Predicated region
    $region6: #{tpu_custom_call.1} parent=1 // pred_check
      _
    $region7: #{tpu_custom_call.1} parent=1 // pred_check_branch
      %13 = sbr.rel (0) target = $region9
    $region8: #{tpu_custom_call.1} parent=1 // pred_region
      _
    $region9: #{tpu_custom_call.1} parent=1 // pred_fallthru
      _
    // Predicated region
    $region10: #{tpu_custom_call.1} parent=1 // pred_check
      _
    $region11: #{tpu_custom_call.1} parent=1 // pred_check_branch
      %15 = sbr.rel (0) target = $region13
    $region12: #{tpu_custom_call.1} parent=1 // pred_region
      _
    $region13: #{tpu_custom_call.1} parent=1 // pred_fallthru
      _
    // Predicated region
    $region14: #{tpu_custom_call.1} parent=1 // pred_check
      _
    $region15: #{tpu_custom_call.1} parent=1 // pred_check_branch
      %17 = sbr.rel (0) target = $region17
    $region16: #{tpu_custom_call.1} parent=1 // pred_region
      _
    $region17: #{tpu_custom_call.1} parent=1 // pred_fallthru
      _
    %v18 = vld [vmem:[%s0] sm:$0xff]
    %v19 = vld [vmem:[%s1] sm:$0xff]
    %v20 = vld [vmem:[%s1 + $0x8] sm:$0xff]
    %v21 = vld [vmem:[%s1 + $0x10] sm:$0xff]
    %v22 = vld [vmem:[%s2] sm:$0xff]
    %v23 = vld [vmem:[%s2 + $0x8] sm:$0xff]
    %v24 = vld [vmem:[%s2 + $0x10] sm:$0xff]
    %v25 = vld [vmem:[%s3] sm:$0xff]
    %v26 = vld [vmem:[%s3 + $0x8] sm:$0xff]
    %v27 = vld [vmem:[%s3 + $0x10] sm:$0xff]
    %v28 = vld [vmem:[%s3 + $0x18] sm:$0xff]
    %v29 = vld [vmem:[%s3 + $0x20] sm:$0xff]
    %v30 = vld [vmem:[%s3 + $0x28] sm:$0xff]
    %v31 = vld [vmem:[%s3 + $0x30] sm:$0xff]
    %v32 = vld [vmem:[%s3 + $0x38] sm:$0xff]
    %v33 = vld [vmem:[%s3 + $0x40] sm:$0xff]
    %v34 = vld [vmem:[%s3 + $0x48] sm:$0xff]
    %v35 = vld [vmem:[%s3 + $0x50] sm:$0xff]
    %v36 = vld [vmem:[%s3 + $0x58] sm:$0xff]
    %v37 = vld [vmem:[%s3 + $0x60] sm:$0xff]
    %v38 = vld [vmem:[%s3 + $0x68] sm:$0xff]
    %v39 = vld [vmem:[%s3 + $0x70] sm:$0xff]
    %v40 = vld [vmem:[%s3 + $0x78] sm:$0xff]
    %v41 = vld [vmem:[%s3 + $0x80] sm:$0xff]
    %v42 = vld [vmem:[%s3 + $0x88] sm:$0xff]
    %v43 = vld [vmem:[%s3 + $0x90] sm:$0xff]
    %v44 = vld [vmem:[%s3 + $0x98] sm:$0xff]
    %v45 = vld [vmem:[%s3 + $0xa0] sm:$0xff]
    %v46 = vld [vmem:[%s3 + $0xa8] sm:$0xff]
    %v47 = vld [vmem:[%s3 + $0xb0] sm:$0xff]
    %v48 = vld [vmem:[%s3 + $0xb8] sm:$0xff]
    %v49 = vld [vmem:[%s3 + $0xc0] sm:$0x3f]
    %51 = vrot.lane.b32.xlu0 %v18, 125
    %v52 = vpop.permute.xlu0 %51
    %v54 = vsub.f32 %v18, %v52
    %v55 = vmul.f32 %v54, %v54
    %vm56 = vcmask 23552
    %v57 = vsel %vm56, %v55, 0.0
    %58 = vadd.xlane.f32.xlu0 %v57
    %v59 = vpop.xlane.xlu0 %58
    %v60 = vrot.slane %v59, 4
    %v61 = vadd.f32 %v59, %v60
    %v62 = vrot.slane %v61, 2
    %v63 = vadd.f32 %v61, %v62
    %v64 = vrot.slane %v63, 1
    %v65 = vadd.f32 %v63, %v64
    %s66 = vtos %v65
    %s67 = smul.f32 %s66, 0.0625
    %vm68 = vcmask 539648
    %v69 = vsel %vm68, %v19, -inf
    %70 = vmax.xlane.f32.xlu0 %v69
    %v71 = vpop.xlane.xlu0 %70
    %v72 = vsel %vm68, %v20, -inf
    %73 = vmax.xlane.f32.xlu0 %v72
    %v74 = vpop.xlane.xlu0 %73
    %v75 = vsel %vm68, %v21, -inf
    %76 = vmax.xlane.f32.xlu0 %v75
    %v77 = vpop.xlane.xlu0 %76
    %v78 = vsub.f32 %v19, %v71
    %v79 = vsub.f32 %v20, %v74
    %v80 = vsub.f32 %v21, %v77
    %v81 = vmul.f32 %v78, 1.442695
    %v82 = vpow.pop %v81
    %v83 = vmul.f32 %v79, 1.442695
    %v84 = vpow.pop %v83
    %v85 = vmul.f32 %v80, 1.442695
    %v86 = vpow.pop %v85
    %v87 = vsel %vm68, %v82, 0.0
    %88 = vadd.xlane.f32.xlu0 %v87
    %v89 = vpop.xlane.xlu0 %88
    %v90 = vsel %vm68, %v84, 0.0
    %91 = vadd.xlane.f32.xlu0 %v90
    %v92 = vpop.xlane.xlu0 %91
    %v93 = vsel %vm68, %v86, 0.0
    %94 = vadd.xlane.f32.xlu0 %v93
    %v95 = vpop.xlane.xlu0 %94
    %v96 = vlog2.pop %v89
    %v97 = vmul.f32 %v96, 0.6931472
    %v98 = vlog2.pop %v92
    %v99 = vmul.f32 %v98, 0.6931472
    %v100 = vlog2.pop %v95
    %v101 = vmul.f32 %v100, 0.6931472
    %v102 = vadd.f32 %v71, %v97
    %v103 = vadd.f32 %v74, %v99
    %v104 = vadd.f32 %v77, %v101
    %v105 = vlaneseq
    %v106 = vand.u32 %v105, 127
    %107 = vset.pattern.permute.xlu0 0
    %108 = vperm.xlu0 %107, %v22
    %v109 = vpop.permute.xlu0 %108
    %110 = vset.pattern.permute.xlu0 0
    %111 = vperm.xlu0 %110, %v23
    %v112 = vpop.permute.xlu0 %111
    %113 = vset.pattern.permute.xlu0 0
    %114 = vperm.xlu0 %113, %v24
    %v115 = vpop.permute.xlu0 %114
    %vm116 = vcmp.eq.s32.totalorder %v106, %v109
    %vm117 = vcmp.eq.s32.totalorder %v106, %v112
    %vm118 = vcmp.eq.s32.totalorder %v106, %v115
    %v119 = vsel %vm116, %v19, 0.0
    %v120 = vsel %vm117, %v20, 0.0
    %v121 = vsel %vm118, %v21, 0.0
    %v122 = vsel %vm68, %v119, 0.0
    %123 = vadd.xlane.f32.xlu0 %v122
    %v124 = vpop.xlane.xlu0 %123
    %v125 = vsel %vm68, %v120, 0.0
    %126 = vadd.xlane.f32.xlu0 %v125
    %v127 = vpop.xlane.xlu0 %126
    %v128 = vsel %vm68, %v121, 0.0
    %129 = vadd.xlane.f32.xlu0 %v128
    %v130 = vpop.xlane.xlu0 %129
    %v131 = vsub.f32 %v102, %v124
    %v132 = vsub.f32 %v103, %v127
    %v133 = vsub.f32 %v104, %v130
    %vm134 = vcmask 7168
    %v135 = vsel %vm134, %v131, 0.0
    %v136 = vsel %vm134, %v132, 0.0
    %v137 = vadd.f32 %v135, %v136
    %v138 = vsel %vm134, %v133, 0.0
    %v139 = vadd.f32 %v137, %v138
    %140 = vadd.xlane.f32.xlu0 %v139
    %v141 = vpop.xlane.xlu0 %140
    %v142 = vrot.slane %v141, 4
    %v143 = vadd.f32 %v141, %v142
    %v144 = vrot.slane %v143, 2
    %v145 = vadd.f32 %v143, %v144
    %v146 = vrot.slane %v145, 1
    %v147 = vadd.f32 %v145, %v146
    %s148 = vtos %v147
    %s149 = smul.f32 %s148, 0.125
    %s150 = sadd.f32 %s67, %s149
    %vm151 = vcmask 720400
    %v152 = vsel %vm151, %v19, -inf
    %153 = vmax.xlane.f32.xlu0 %v152
    %v154 = vpop.xlane.xlu0 %153
    %v155 = vsel %vm151, %v20, -inf
    %156 = vmax.xlane.f32.xlu0 %v155
    %v157 = vpop.xlane.xlu0 %156
    %v158 = vsel %vm151, %v21, -inf
    %159 = vmax.xlane.f32.xlu0 %v158
    %v160 = vpop.xlane.xlu0 %159
    %v161 = vsub.f32 %v19, %v154
    %v162 = vsub.f32 %v20, %v157
    %v163 = vsub.f32 %v21, %v160
    %v164 = vmul.f32 %v161, 1.442695
    %v165 = vpow.pop %v164
    %v166 = vmul.f32 %v162, 1.442695
    %v167 = vpow.pop %v166
    %v168 = vmul.f32 %v163, 1.442695
    %v169 = vpow.pop %v168
    %173 = vrot.lane.b32.xlu0 %v165, 62
    %v174 = vpop.permute.xlu0 %173
    %175 = vrot.lane.b32.xlu0 %v167, 62
    %v176 = vpop.permute.xlu0 %175
    %177 = vrot.lane.b32.xlu0 %v169, 62
    %v178 = vpop.permute.xlu0 %177
    %vm182 = vcmask 179200
    %v183 = vsel %vm182, %v174, 0.0
    %184 = vadd.xlane.f32.xlu0 %v183
    %v185 = vpop.xlane.xlu0 %184
    %v186 = vsel %vm182, %v176, 0.0
    %187 = vadd.xlane.f32.xlu0 %v186
    %v188 = vpop.xlane.xlu0 %187
    %v189 = vsel %vm182, %v178, 0.0
    %190 = vadd.xlane.f32.xlu0 %v189
    %v191 = vpop.xlane.xlu0 %190
    %v192 = vlog2.pop %v185
    %v193 = vmul.f32 %v192, 0.6931472
    %v194 = vlog2.pop %v188
    %v195 = vmul.f32 %v194, 0.6931472
    %v196 = vlog2.pop %v191
    %v197 = vmul.f32 %v196, 0.6931472
    %v198 = vadd.f32 %v154, %v193
    %v199 = vadd.f32 %v157, %v195
    %v200 = vadd.f32 %v160, %v197
    %201 = vset.pattern.permute.xlu0 1
    %202 = vperm.xlu0 %201, %v22
    %v203 = vpop.permute.xlu0 %202
    %204 = vset.pattern.permute.xlu0 1
    %205 = vperm.xlu0 %204, %v23
    %v206 = vpop.permute.xlu0 %205
    %207 = vset.pattern.permute.xlu0 1
    %208 = vperm.xlu0 %207, %v24
    %v209 = vpop.permute.xlu0 %208
    %vm210 = vcmp.eq.s32.totalorder %v106, %v203
    %vm211 = vcmp.eq.s32.totalorder %v106, %v206
    %vm212 = vcmp.eq.s32.totalorder %v106, %v209
    %216 = vrot.lane.b32.xlu0 %v19, 62
    %v217 = vpop.permute.xlu0 %216
    %218 = vrot.lane.b32.xlu0 %v20, 62
    %v219 = vpop.permute.xlu0 %218
    %220 = vrot.lane.b32.xlu0 %v21, 62
    %v221 = vpop.permute.xlu0 %220
    %v225 = vsel %vm210, %v217, 0.0
    %v226 = vsel %vm211, %v219, 0.0
    %v227 = vsel %vm212, %v221, 0.0
    %v228 = vsel %vm182, %v225, 0.0
    %229 = vadd.xlane.f32.xlu0 %v228
    %v230 = vpop.xlane.xlu0 %229
    %v231 = vsel %vm182, %v226, 0.0
    %232 = vadd.xlane.f32.xlu0 %v231
    %v233 = vpop.xlane.xlu0 %232
    %v234 = vsel %vm182, %v227, 0.0
    %235 = vadd.xlane.f32.xlu0 %v234
    %v236 = vpop.xlane.xlu0 %235
    %v237 = vsub.f32 %v198, %v230
    %v238 = vsub.f32 %v199, %v233
    %v239 = vsub.f32 %v200, %v236
    %v240 = vsel %vm134, %v237, 0.0
    %v241 = vsel %vm134, %v238, 0.0
    %v242 = vadd.f32 %v240, %v241
    %v243 = vsel %vm134, %v239, 0.0
    %v244 = vadd.f32 %v242, %v243
    %245 = vadd.xlane.f32.xlu0 %v244
    %v246 = vpop.xlane.xlu0 %245
    %v247 = vrot.slane %v246, 4
    %v248 = vadd.f32 %v246, %v247
    %v249 = vrot.slane %v248, 2
    %v250 = vadd.f32 %v248, %v249
    %v251 = vrot.slane %v250, 1
    %v252 = vadd.f32 %v250, %v251
    %s253 = vtos %v252
    %s254 = smul.f32 %s253, 0.25
    %s255 = sadd.f32 %s150, %s254
    %256 = vrot.lane.b32.xlu0 %v22, 126
    %v257 = vpop.permute.xlu0 %256
    %258 = vrot.lane.b32.xlu0 %v23, 126
    %v259 = vpop.permute.xlu0 %258
    %260 = vrot.lane.b32.xlu0 %v24, 126
    %v261 = vpop.permute.xlu0 %260
    %v262 = vadd.s32 %v22, %v257
    %v263 = vadd.s32 %v23, %v259
    %v264 = vadd.s32 %v24, %v261
    %v265 = vadd.s32 %v106, 128
    %266 = vset.pattern.permute.xlu0 0
    %267 = vperm.xlu0 %266, %v262
    %v268 = vpop.permute.xlu0 %267
    %269 = vset.pattern.permute.xlu0 0
    %270 = vperm.xlu0 %269, %v263
    %v271 = vpop.permute.xlu0 %270
    %272 = vset.pattern.permute.xlu0 0
    %273 = vperm.xlu0 %272, %v264
    %v274 = vpop.permute.xlu0 %273
    %vm275 = vcmp.eq.s32.totalorder %v106, %v268
    %vm276 = vcmp.eq.s32.totalorder %v265, %v268
    %vm277 = vcmp.eq.s32.totalorder %v106, %v271
    %vm278 = vcmp.eq.s32.totalorder %v265, %v271
    %vm279 = vcmp.eq.s32.totalorder %v106, %v274
    %vm280 = vcmp.eq.s32.totalorder %v265, %v274
    %v281 = vsel %vm275, 1, 0
    %v282 = vsel %vm276, 1, 0
    %v283 = vsel %vm277, 1, 0
    %v284 = vsel %vm278, 1, 0
    %v285 = vsel %vm279, 1, 0
    %v286 = vsel %vm280, 1, 0
    %v287 = vcvt.s32.f32 %v281
    %v288 = vcvt.s32.f32 %v282
    %v289 = vcvt.s32.f32 %v283
    %v290 = vcvt.s32.f32 %v284
    %v291 = vcvt.s32.f32 %v285
    %v292 = vcvt.s32.f32 %v286
    %vm293 = vcmask 572416
    %v295 = vsel %vm293, %v288, 0
    %v298 = vsel %vm293, %v290, 0
    %v301 = vsel %vm293, %v292, 0
    %vm303 = vcmask 1045504
    %v305 = vsel %vm303, %v49, 0
    %307 = vmatprep.subr.mxu0 0.0
    %308 = vmatpush1.msra.mxu0 %v25
    %309 = vmatprep.subr.mxu0 0.0
    %310 = vmatpush1.msra.mxu0 %v26
    %311 = vmatprep.subr.mxu0 0.0
    %312 = vmatpush1.msra.mxu0 %v27
    %313 = vmatprep.subr.mxu0 0.0
    %314 = vmatpush1.msra.mxu0 %v28
    %315 = vmatprep.subr.mxu0 0.0
    %316 = vmatpush1.msra.mxu0 %v29
    %317 = vmatprep.subr.mxu0 0.0
    %318 = vmatpush1.msra.mxu0 %v30
    %319 = vmatprep.subr.mxu0 0.0
    %320 = vmatpush1.msra.mxu0 %v31
    %321 = vmatprep.subr.mxu0 0.0
    %322 = vmatpush1.msra.mxu0 %v32
    %323 = vmatprep.subr.mxu0 0.0
    %324 = vmatpush1.msra.mxu0 %v33
    %325 = vmatprep.subr.mxu0 0.0
    %326 = vmatpush1.msra.mxu0 %v34
    %327 = vmatprep.subr.mxu0 0.0
    %328 = vmatpush1.msra.mxu0 %v35
    %329 = vmatprep.subr.mxu0 0.0
    %330 = vmatpush1.msra.mxu0 %v36
    %331 = vmatprep.subr.mxu0 0.0
    %332 = vmatpush1.msra.mxu0 %v37
    %333 = vmatprep.subr.mxu0 0.0
    %334 = vmatpush1.msra.mxu0 %v38
    %335 = vmatprep.subr.mxu0 0.0
    %336 = vmatpush1.msra.mxu0 %v39
    %337 = vmatprep.subr.mxu0 0.0
    %338 = vmatpush1.msra.mxu0 %v40
    %339 = vmatprep.subr.mxu0 0.0
    %340 = vmatpush1.msra.mxu0 %v41
    %341 = vmatprep.subr.mxu0 0.0
    %342 = vmatpush1.msra.mxu0 %v42
    %343 = vmatprep.subr.mxu0 0.0
    %344 = vmatpush1.msra.mxu0 %v43
    %345 = vmatprep.subr.mxu0 0.0
    %346 = vmatpush1.msra.mxu0 %v44
    %347 = vmatprep.subr.mxu0 0.0
    %348 = vmatpush1.msra.mxu0 %v45
    %349 = vmatprep.subr.mxu0 0.0
    %350 = vmatpush1.msra.mxu0 %v46
    %351 = vmatprep.subr.mxu0 0.0
    %352 = vmatpush1.msra.mxu0 %v47
    %353 = vmatprep.subr.mxu0 0.0
    %354 = vmatpush1.msra.mxu0 %v48
    %355 = vmatprep.subr.mxu0 0.0
    %356 = vmatpush1.msra.mxu0 %v305
    %357 = vmatprep.subr.mxu0 0.0
    %358 = vmatpush1.msra.mxu0 0.0
    %359 = vmatprep.subr.mxu0 0.0
    %360 = vmatpush1.msra.mxu0 0.0
    %361 = vmatprep.subr.mxu0 0.0
    %362 = vmatpush1.msra.mxu0 0.0
    %363 = vmatprep.subr.mxu0 0.0
    %364 = vmatpush1.msra.mxu0 0.0
    %365 = vmatprep.subr.mxu0 0.0
    %366 = vmatpush1.msra.mxu0 0.0
    %367 = vmatprep.subr.mxu0 0.0
    %368 = vmatpush1.msra.mxu0 0.0
    %369 = vmatprep.subr.mxu0 0.0
    %370 = vmatpush1.msra.mxu0 0.0
    %371 = vmatprep.mubr.f32.mxu0 %v295
    %372 = vmatmul.mubr.f32.gmra.mrb[0].mxu0 %v287
    %v373 = vpop.f32.mrb[0].mxu0
    %v374 = vadd.f32 0.0, %v373
    %v375 = vpop.f32.mrb[0].mxu0
    %376 = vmatprep.mubr.f32.mxu0 %v298
    %377 = vmatmul.mubr.f32.gmra.mrb[0].mxu0 %v289
    %v378 = vpop.f32.mrb[0].mxu0
    %v379 = vadd.f32 0.0, %v378
    %v380 = vpop.f32.mrb[0].mxu0
    %381 = vmatprep.mubr.f32.mxu0 %v301
    %382 = vmatmul.mubr.f32.gmra.mrb[0].mxu0 %v291
    %v383 = vpop.f32.mrb[0].mxu0
    %v384 = vadd.f32 0.0, %v383
    %v385 = vpop.f32.mrb[0].mxu0
    %386 = vdwg.mxu0
    %390 = vrot.lane.b32.xlu0 %v374, 88
    %v391 = vpop.permute.xlu0 %390
    %392 = vrot.lane.b32.xlu0 %v379, 88
    %v393 = vpop.permute.xlu0 %392
    %394 = vrot.lane.b32.xlu0 %v384, 88
    %v395 = vpop.permute.xlu0 %394
    %v399 = vsub.f32 %v19, %v391
    %v400 = vsub.f32 %v20, %v393
    %v401 = vsub.f32 %v21, %v395
    %v402 = vmul.f32 %v399, %v399
    %v403 = vmul.f32 %v400, %v400
    %v404 = vmul.f32 %v401, %v401
    %408 = vrot.lane.b32.xlu0 %v402, 40
    %v409 = vpop.permute.xlu0 %408
    %410 = vrot.lane.b32.xlu0 %v403, 40
    %v411 = vpop.permute.xlu0 %410
    %412 = vrot.lane.b32.xlu0 %v404, 40
    %v413 = vpop.permute.xlu0 %412
    %vm417 = vcmask 261120
    %v418 = vsel %vm417, %v409, 0.0
    %419 = vadd.xlane.f32.xlu0 %v418
    %v420 = vpop.xlane.xlu0 %419
    %v421 = vsel %vm417, %v411, 0.0
    %422 = vadd.xlane.f32.xlu0 %v421
    %v423 = vpop.xlane.xlu0 %422
    %v424 = vsel %vm417, %v413, 0.0
    %425 = vadd.xlane.f32.xlu0 %v424
    %v426 = vpop.xlane.xlu0 %425
    %v427 = vmax.f32 %v420, 1e-12
    %v428 = vmax.f32 %v423, 1e-12
    %v429 = vmax.f32 %v426, 1e-12
    %v430 = vmin.f32 %v427, 1e+12
    %v431 = vmin.f32 %v428, 1e+12
    %v432 = vmin.f32 %v429, 1e+12
    %v433 = vsel %vm134, %v430, 0.0
    %v434 = vsel %vm134, %v431, 0.0
    %v435 = vadd.f32 %v433, %v434
    %v436 = vsel %vm134, %v432, 0.0
    %v437 = vadd.f32 %v435, %v436
    %438 = vadd.xlane.f32.xlu0 %v437
    %v439 = vpop.xlane.xlu0 %438
    %v440 = vrot.slane %v439, 4
    %v441 = vadd.f32 %v439, %v440
    %v442 = vrot.slane %v441, 2
    %v443 = vadd.f32 %v441, %v442
    %v444 = vrot.slane %v443, 1
    %v445 = vadd.f32 %v443, %v444
    %s446 = vtos %v445
    %s447 = smul.f32 %s446, 0.00125
    %s448 = sadd.f32 %s255, %s447
    %s449 = scalar_lea.smem [#allocation2], 0
    %450 = sst [smem:[%s449]] %s448
    // Predicated region
    $region18: #{tpu_custom_call.1} parent=1 // pred_check
      _
    $region19: #{tpu_custom_call.1} parent=1 // pred_check_branch
      %452 = sbr.rel (0) target = $region21
    $region20: #{tpu_custom_call.1} parent=1 // pred_region
      %s454 = ssub.s32 16, 16
      %455 = vsyncadd [#allocation3], %s454
      %458 = dma.smem_to_hbm [#allocation2], 16, %s4, [#allocation3]
    $region21: #{tpu_custom_call.1} parent=1 // pred_fallthru
      _
    // Predicated region
    $region22: #{tpu_custom_call.1} parent=1 // pred_check
      _
    $region23: #{tpu_custom_call.1} parent=1 // pred_check_branch
      %460 = sbr.rel (0) target = $region25
    $region24: #{tpu_custom_call.1} parent=1 // pred_region
      %461 = dma.done [#allocation3], 16
    $region25: #{tpu_custom_call.1} parent=1 // pred_fallthru
      _
    %462 = sfence
    %463 = vsyncpa [#allocation3], 1

</llo_original>
